<compile_context>
chip_gen: v5e
topology: v5e:2x2
jax: 0.10.0
libtpu: 0.0.40
codegen_flags: <defaults>
</compile_context>

<pallas_src>
import jax
import jax.numpy as jnp
from jax import lax
from jax.experimental import pallas as pl
from jax.experimental.pallas import tpu as pltpu


def _round_up(x, m):
    return (x + m - 1) // m * m


# -------------------- Pallas kernel: the hot path --------------------
def useritem_encoder_kernel(x_ref, w_ref, b_ref, out_ref):
    # relu(x @ W^T + b): x [tb, 2E] bf16, W [E, 2E] bf16 (PyTorch Linear
    # layout), single MXU pass with K = 2E contracted on dim 1 of both
    # operands (in-kernel rhs transpose rides the XLU, hidden under DMA),
    # f32 accumulate.
    y = lax.dot_general(
        x_ref[...], w_ref[...],
        dimension_numbers=(((1,), (1,)), ((), ())),
        preferred_element_type=jnp.float32)
    y = y + b_ref[...]                          # [1, E] broadcast over rows
    out_ref[...] = jnp.maximum(y, 0.0).astype(out_ref.dtype)


def useritem_encoder_pallas(combined, W, b, *, block_b=8192,
                            out_dtype=jnp.float32):
    """combined: [B, 2E] float, W: [E, 2E] (PyTorch Linear layout), b: [E].

    Returns relu(combined @ W^T + b) as out_dtype [B, E].
    """
    B, twoE = combined.shape
    E = twoE // 2
    assert W.shape == (E, twoE)
    assert b.shape == (E,)
    assert block_b % 128 == 0

    # Pad the batch only to the 128-lane boundary; ragged last tile is
    # handled by Pallas' masked OOB blocks.
    B_pad = _round_up(B, 128)
    tb = min(block_b, B_pad)
    # Ensure >= 2 grid steps when there is enough work, so the "parallel"
    # batch axis can actually split across v7x's two TensorCores.
    if B_pad >= 256 and pl.cdiv(B_pad, tb) < 2:
        tb = _round_up(pl.cdiv(B_pad, 2), 128)
    grid = (pl.cdiv(B_pad, tb),)

    x = combined.astype(jnp.bfloat16)           # [B, 2E] -> bf16, no transpose
    if B_pad != B:
        x = jnp.pad(x, ((0, B_pad - B), (0, 0)))
    w = W.astype(jnp.bfloat16)                  # [E, 2E]
    b2 = b.reshape(1, E).astype(jnp.float32)    # [1, E]

    out_itemsize = jnp.dtype(out_dtype).itemsize
    cost = pl.CostEstimate(
        flops=2 * B_pad * twoE * E,
        transcendentals=0,
        bytes_accessed=(B_pad * twoE * 2        # bf16 activations in
                        + E * twoE * 2          # bf16 weight
                        + E * 4                 # f32 bias
                        + B_pad * E * out_itemsize),
    )

    out = pl.pallas_call(
        useritem_encoder_kernel,
        out_shape=jax.ShapeDtypeStruct((B_pad, E), out_dtype),
        grid_spec=pltpu.PrefetchScalarGridSpec(
            num_scalar_prefetch=0,
            grid=grid,
            in_specs=[
                pl.BlockSpec((tb, twoE), lambda i: (i, 0)),   # activations: tiled
                pl.BlockSpec((E, twoE), lambda i: (0, 0)),    # weight: pinned
                pl.BlockSpec((1, E), lambda i: (0, 0)),       # bias: pinned
            ],
            out_specs=pl.BlockSpec((tb, E), lambda i: (i, 0)),
        ),
        compiler_params=pltpu.CompilerParams(
            dimension_semantics=("parallel",),   # megacore split on v7x
            vmem_limit_bytes=32 * 1024 * 1024,
        ),
        cost_estimate=cost,
    )(x, w, b2)

    return out[:B]                               # [B, E], no transpose


# -------------------- Glue (plain JAX) --------------------
# TODO(synk): `aggregator.forward` is an external GraphRec module
# (UserItem_Aggregator) not defined in this file; it is stood in for by a
# deterministic rating-weighted masked mean.  Fusing this embedding gather +
# weighted mean into the Pallas DMA pipeline (scalar-prefetched node/history
# indices, pl.Element row blocks or manual make_async_copy gather) is the
# next step at production scale; kept in XLA here because it is not part of
# this module's own compute (Linear(2E, E) + ReLU).
def mean_aggregator(feature_table, hist_items, hist_ratings, hist_mask):
    gathered = feature_table[hist_items].astype(jnp.float32)    # [B, L, E]
    w = (hist_ratings * hist_mask)[..., None]                   # [B, L, 1]
    summed = (gathered * w).sum(axis=1)                         # [B, E]
    denom = jnp.maximum((hist_ratings * hist_mask).sum(axis=1, keepdims=True),
                        1.0)
    return summed / denom


def useritem_encoder_forward(nodes, feature_table, hist_items, hist_ratings,
                             hist_mask, W, b):
    # self_features = feature_vector.weight[nodes]   (gather = glue)
    self_feats = feature_table[nodes].astype(jnp.float32)       # [B, E]
    neigh_feats = mean_aggregator(feature_table, hist_items[nodes],
                                  hist_ratings[nodes], hist_mask[nodes])
    combined = jnp.concatenate([self_feats, neigh_feats], axis=1)   # [B, 2E]
    return useritem_encoder_pallas(combined, W, b)


if __name__ == "__main__":
    key = jax.random.PRNGKey(0)
    k_feat, k_w, k_b, k_hist, k_rate = jax.random.split(key, 5)

    num_nodes = 16     # rows in the embedding table
    embed_dim = 32     # E
    batch = 8          # |nodes|
    hist_len = 5       # padded history length

    # Features carried in bf16 (the pipeline is memory-bound); params f32.
    feature_table = jax.random.normal(
        k_feat, (num_nodes, embed_dim), dtype=jnp.float32).astype(jnp.bfloat16)
    # nn.Linear(2E, E): weight kept in PyTorch layout [E, 2E].
    W = (jax.random.normal(k_w, (embed_dim, 2 * embed_dim), jnp.float32)
         * (1.0 / jnp.sqrt(2.0 * embed_dim)))
    b = jax.random.normal(k_b, (embed_dim,), jnp.float32) * 0.01

    # Synthetic per-node history (indices, ratings, validity mask).
    hist_items = jax.random.randint(k_hist, (num_nodes, hist_len),
                                    0, num_nodes, dtype=jnp.int32)
    hist_ratings = jax.random.uniform(k_rate, (num_nodes, hist_len),
                                      jnp.float32, 1.0, 5.0)
    hist_mask = (jnp.arange(hist_len)[None, :]
                 < (jnp.arange(num_nodes)[:, None] % hist_len + 1)
                 ).astype(jnp.float32)

    nodes = jnp.arange(batch, dtype=jnp.int32)

    out = useritem_encoder_forward(nodes, feature_table, hist_items,
                                   hist_ratings, hist_mask, W, b)
    out = jax.block_until_ready(out)

    # Pure-JAX reference with the same bf16 inputs / f32 accumulation.
    # NOTE: weights are deliberately carried in bf16 (PyTorch Linear is f32);
    # tolerance 2e-3 absorbs the cast.
    self_feats = feature_table[nodes].astype(jnp.float32)
    neigh_feats = mean_aggregator(feature_table, hist_items[nodes],
                                  hist_ratings[nodes], hist_mask[nodes])
    combined = jnp.concatenate([self_feats, neigh_feats], axis=1)
    x_bf = combined.astype(jnp.bfloat16).astype(jnp.float32)
    w_bf = W.astype(jnp.bfloat16).astype(jnp.float32)
    ref = jnp.maximum(x_bf @ w_bf.T + b, 0.0)

    assert out.shape == (batch, embed_dim)
    assert jnp.allclose(out, ref, atol=2e-3, rtol=2e-3), \
        float(jnp.max(jnp.abs(out - ref)))

    print("KERNEL_OK")
</pallas_src>

<mosaic_0001>
module attributes {stable_mosaic.version = 11 : i64} {
  func.func @useritem_encoder_kernel(%arg0: i32, %arg1: memref<128x64xbf16, #tpu.memory_space<vmem>>, %arg2: memref<32x64xbf16, #tpu.memory_space<vmem>>, %arg3: memref<1x32xf32, #tpu.memory_space<vmem>>, %arg4: memref<128x32xf32, #tpu.memory_space<vmem>>) attributes {dimension_semantics = [#tpu.dimension_semantics<parallel>], iteration_bounds = array<i64: 1>, scalar_prefetch = 0 : i64, scratch_operands = 0 : i64, tpu.core_type = #tpu.core_type<tc>, window_params = [{transform_indices = @transform_0, window_bounds = array<i64: 128, 64>}, {pipeline_mode = #tpu.pipeline_mode<synchronous>, transform_indices = @transform_1, window_bounds = array<i64: 32, 64>}, {pipeline_mode = #tpu.pipeline_mode<synchronous>, transform_indices = @transform_2, window_bounds = array<i64: 1, 32>}, {transform_indices = @transform_3, window_bounds = array<i64: 128, 32>}]} {
    %c0 = arith.constant 0 : index
    %c0_0 = arith.constant 0 : index
    %0 = vector.load %arg1[%c0, %c0_0] : memref<128x64xbf16, #tpu.memory_space<vmem>>, vector<128x64xbf16>
    %c0_1 = arith.constant 0 : index
    %c0_2 = arith.constant 0 : index
    %1 = vector.load %arg2[%c0_1, %c0_2] : memref<32x64xbf16, #tpu.memory_space<vmem>>, vector<32x64xbf16>
    %cst = arith.constant dense<0.000000e+00> : vector<128x32xf32>
    %2 = tpu.matmul %0, %1, %cst {dimension_numbers = #tpu.dot_dimension_numbers<[1], [1], [0], [0], [0, 0, 1, 0], [], []>} : vector<128x64xbf16>, vector<32x64xbf16>, vector<128x32xf32> -> vector<128x32xf32>
    %c0_3 = arith.constant 0 : index
    %c0_4 = arith.constant 0 : index
    %3 = vector.load %arg3[%c0_3, %c0_4] : memref<1x32xf32, #tpu.memory_space<vmem>>, vector<1x32xf32>
    %4 = vector.broadcast %3 : vector<1x32xf32> to vector<128x32xf32>
    %5 = arith.addf %2, %4 : vector<128x32xf32>
    %cst_5 = arith.constant 0.000000e+00 : f32
    %6 = vector.broadcast %cst_5 : f32 to vector<128x32xf32>
    %7 = arith.maximumf %5, %6 : vector<128x32xf32>
    %c0_6 = arith.constant 0 : index
    %c0_7 = arith.constant 0 : index
    %8 = vector.load %arg4[%c0_6, %c0_7] : memref<128x32xf32, #tpu.memory_space<vmem>>, vector<128x32xf32>
    tpu.vector_store %arg4[%c0_6, %c0_7], %7 {strides = array<i32>} : memref<128x32xf32, #tpu.memory_space<vmem>>, vector<128x32xf32>,
    return
  }
  func.func @transform_0(%arg0: i32) -> (i32, i32) {
    %c0_i32 = arith.constant 0 : i32
    %c0_i32_0 = arith.constant 0 : i32
    return %arg0, %c0_i32 : i32, i32
  }
  func.func @transform_1(%arg0: i32) -> (i32, i32) {
    %c0_i32 = arith.constant 0 : i32
    %c0_i32_0 = arith.constant 0 : i32
    %c0_i32_1 = arith.constant 0 : i32
    return %c0_i32, %c0_i32_0 : i32, i32
  }
  func.func @transform_2(%arg0: i32) -> (i32, i32) {
    %c0_i32 = arith.constant 0 : i32
    %c0_i32_0 = arith.constant 0 : i32
    %c0_i32_1 = arith.constant 0 : i32
    return %c0_i32, %c0_i32_0 : i32, i32
  }
  func.func @transform_3(%arg0: i32) -> (i32, i32) {
    %c0_i32 = arith.constant 0 : i32
    %c0_i32_0 = arith.constant 0 : i32
    return %arg0, %c0_i32 : i32, i32
  }
}

</mosaic_0001>

<llo_original>
// kernel: tpu_custom_call.1
$region0: #{tpu_custom_call.1}
  #allocation0 [shape = 'u32[]', space=smem, size = 0x4, offset = 0x4, fixed_abs, tag = 'smem constant byte address 0x4 - core index']
  #allocation1 [shape = 'u32[72,128]{1,0:T(1,128)}', space=vmem, size = 0x9000, scoped, tag = 'internal scratch']
  %s0 = inlined_call_operand.vmem [shape: bf16[128,64], index: 0, kind: input, shape index: {}]
  %s1 = inlined_call_operand.vmem [shape: bf16[32,64], index: 1, kind: input, shape index: {}]
  %s2 = inlined_call_operand.vmem [shape: f32[1,32], index: 2, kind: input, shape index: {}]
  %s3 = inlined_call_operand.vmem [shape: f32[128,32], index: 3, kind: output, shape index: {}]
  %s4 = sld [smem:[#allocation0]]
  $region22: #{tpu_custom_call.1} parent=0
    _
  %s6 = ssub.s32 1, %s4
  %s7 = scalar_select 0, %s6, %s4
  // Predicated region
  $region2: #{tpu_custom_call.1} parent=0 // pred_check
    _
  $region3: #{tpu_custom_call.1} parent=0 // pred_check_branch
    %9 = sbr.rel (0) target = $region5
  $region4: #{tpu_custom_call.1} parent=0 // pred_region
    _
  $region5: #{tpu_custom_call.1} parent=0 // pred_fallthru
    _
  // Predicated region
  $region6: #{tpu_custom_call.1} parent=0 // pred_check
    _
  $region7: #{tpu_custom_call.1} parent=0 // pred_check_branch
    %11 = sbr.rel (0) target = $region9
  $region8: #{tpu_custom_call.1} parent=0 // pred_region
    _
  $region9: #{tpu_custom_call.1} parent=0 // pred_fallthru
    _
  // Predicated region
  $region10: #{tpu_custom_call.1} parent=0 // pred_check
    _
  $region11: #{tpu_custom_call.1} parent=0 // pred_check_branch
    %13 = sbr.rel (0) target = $region13
  $region12: #{tpu_custom_call.1} parent=0 // pred_region
    _
  $region13: #{tpu_custom_call.1} parent=0 // pred_fallthru
    _
  %v15 = vld [vmem:[%s0] sm:$0xf]
  %v16 = vld [vmem:[%s0 + $0x4] sm:$0xf]
  %v17 = vld [vmem:[%s0 + $0x8] sm:$0xf]
  %v18 = vld [vmem:[%s0 + $0xc] sm:$0xf]
  %v19 = vld [vmem:[%s0 + $0x10] sm:$0xf]
  %v20 = vld [vmem:[%s0 + $0x14] sm:$0xf]
  %v21 = vld [vmem:[%s0 + $0x18] sm:$0xf]
  %v22 = vld [vmem:[%s0 + $0x1c] sm:$0xf]
  %v23 = vld [vmem:[%s0 + $0x20] sm:$0xf]
  %v24 = vld [vmem:[%s0 + $0x24] sm:$0xf]
  %v25 = vld [vmem:[%s0 + $0x28] sm:$0xf]
  %v26 = vld [vmem:[%s0 + $0x2c] sm:$0xf]
  %v27 = vld [vmem:[%s0 + $0x30] sm:$0xf]
  %v28 = vld [vmem:[%s0 + $0x34] sm:$0xf]
  %v29 = vld [vmem:[%s0 + $0x38] sm:$0xf]
  %v30 = vld [vmem:[%s0 + $0x3c] sm:$0xf]
  %v31 = vld [vmem:[%s1] sm:$0xf]
  %v32 = vld [vmem:[%s1 + $0x4] sm:$0xf]
  %v33 = vld [vmem:[%s1 + $0x8] sm:$0xf]
  %v34 = vld [vmem:[%s1 + $0xc] sm:$0xf]
  %v35 = vld [vmem:[%s2] sm:$0x1]
  %v37 = vperm.slane %v35, 0
  %v55 = vunpack.c.l.b16 %v15
  %v56 = vunpack.c.l.b16 %v16
  %v57 = vunpack.c.l.b16 %v17
  %v58 = vunpack.c.l.b16 %v18
  %v59 = vunpack.c.l.b16 %v19
  %v60 = vunpack.c.l.b16 %v20
  %v61 = vunpack.c.l.b16 %v21
  %v62 = vunpack.c.l.b16 %v22
  %v63 = vunpack.c.l.b16 %v23
  %v64 = vunpack.c.l.b16 %v24
  %v65 = vunpack.c.l.b16 %v25
  %v66 = vunpack.c.l.b16 %v26
  %v67 = vunpack.c.l.b16 %v27
  %v68 = vunpack.c.l.b16 %v28
  %v69 = vunpack.c.l.b16 %v29
  %v70 = vunpack.c.l.b16 %v30
  %v71 = vpack.c.b16 %v56, %v55
  %v72 = vpack.c.b16 %v58, %v57
  %v73 = vpack.c.b16 %v60, %v59
  %v74 = vpack.c.b16 %v62, %v61
  %v75 = vpack.c.b16 %v64, %v63
  %v76 = vpack.c.b16 %v66, %v65
  %v77 = vpack.c.b16 %v68, %v67
  %v78 = vpack.c.b16 %v70, %v69
  %v83 = vunpack.c.l.b16 %v31
  %v84 = vunpack.c.l.b16 %v32
  %v85 = vunpack.c.l.b16 %v33
  %v86 = vunpack.c.l.b16 %v34
  %v87 = vpack.c.b16 %v84, %v83
  %v88 = vpack.c.b16 %v86, %v85
  %vm89 = vcmask 523264
  %v91 = vsel %vm89, %v71, 0
  %v94 = vsel %vm89, %v72, 0
  %v97 = vsel %vm89, %v73, 0
  %v100 = vsel %vm89, %v74, 0
  %v103 = vsel %vm89, %v75, 0
  %v106 = vsel %vm89, %v76, 0
  %v109 = vsel %vm89, %v77, 0
  %v112 = vsel %vm89, %v78, 0
  %v115 = vsel %vm89, %v87, 0
  %v118 = vsel %vm89, %v88, 0
  %120 = vmatpush.bf16.xpose.msra.mxu0 0
  %121 = vmatpush.bf16.xpose.msra.mxu0 0
  %122 = vmatpush.bf16.xpose.msra.mxu0 0
  %123 = vmatpush.bf16.xpose.msra.mxu0 0
  %124 = vmatpush.bf16.xpose.msra.mxu0 0
  %125 = vmatpush.bf16.xpose.msra.mxu0 0
  %126 = vmatpush.bf16.xpose.msra.mxu0 %v118
  %127 = vmatpush.bf16.xpose.msra.mxu0 %v115
  %128 = vmatmul.bf16.gmra.mxu0 %v91
  %v129 = vpop.f32.mrf.mxu0
  %v130 = vadd.f32 %v37, %v129
  %v131 = vpop.f32.mrf.mxu0
  %v132 = vadd.f32 %v37, %v131
  %133 = vmatmul.bf16.gmra.mxu0 %v94
  %v134 = vpop.f32.mrf.mxu0
  %v135 = vadd.f32 %v37, %v134
  %v136 = vpop.f32.mrf.mxu0
  %v137 = vadd.f32 %v37, %v136
  %138 = vmatmul.bf16.gmra.mxu0 %v97
  %v139 = vpop.f32.mrf.mxu0
  %v140 = vadd.f32 %v37, %v139
  %v141 = vpop.f32.mrf.mxu0
  %v142 = vadd.f32 %v37, %v141
  %143 = vmatmul.bf16.gmra.mxu0 %v100
  %v144 = vpop.f32.mrf.mxu0
  %v145 = vadd.f32 %v37, %v144
  %v146 = vpop.f32.mrf.mxu0
  %v147 = vadd.f32 %v37, %v146
  %148 = vmatmul.bf16.gmra.mxu0 %v103
  %v149 = vpop.f32.mrf.mxu0
  %v150 = vadd.f32 %v37, %v149
  %v151 = vpop.f32.mrf.mxu0
  %v152 = vadd.f32 %v37, %v151
  %153 = vmatmul.bf16.gmra.mxu0 %v106
  %v154 = vpop.f32.mrf.mxu0
  %v155 = vadd.f32 %v37, %v154
  %v156 = vpop.f32.mrf.mxu0
  %v157 = vadd.f32 %v37, %v156
  %158 = vmatmul.bf16.gmra.mxu0 %v109
  %v159 = vpop.f32.mrf.mxu0
  %v160 = vadd.f32 %v37, %v159
  %v161 = vpop.f32.mrf.mxu0
  %v162 = vadd.f32 %v37, %v161
  %163 = vmatmul.bf16.gmra.mxu0 %v112
  %v164 = vpop.f32.mrf.mxu0
  %v165 = vadd.f32 %v37, %v164
  %v166 = vpop.f32.mrf.mxu0
  %v167 = vadd.f32 %v37, %v166
  %168 = vdwg.mxu0
  %v169 = vmax.f32 %v130, 0.0
  %v170 = vmax.f32 %v132, 0.0
  %v171 = vmax.f32 %v135, 0.0
  %v172 = vmax.f32 %v137, 0.0
  %v173 = vmax.f32 %v140, 0.0
  %v174 = vmax.f32 %v142, 0.0
  %v175 = vmax.f32 %v145, 0.0
  %v176 = vmax.f32 %v147, 0.0
  %v177 = vmax.f32 %v150, 0.0
  %v178 = vmax.f32 %v152, 0.0
  %v179 = vmax.f32 %v155, 0.0
  %v180 = vmax.f32 %v157, 0.0
  %v181 = vmax.f32 %v160, 0.0
  %v182 = vmax.f32 %v162, 0.0
  %v183 = vmax.f32 %v165, 0.0
  %v184 = vmax.f32 %v167, 0.0
  %vm185 = vcmask 261120
  %186 = vst.msk [vmem:[%s3] sm:$0xff] %vm185, %v169
  %187 = vst.msk [vmem:[%s3 + $0x8] sm:$0xff] %vm185, %v170
  %188 = vst.msk [vmem:[%s3 + $0x10] sm:$0xff] %vm185, %v171
  %189 = vst.msk [vmem:[%s3 + $0x18] sm:$0xff] %vm185, %v172
  %190 = vst.msk [vmem:[%s3 + $0x20] sm:$0xff] %vm185, %v173
  %191 = vst.msk [vmem:[%s3 + $0x28] sm:$0xff] %vm185, %v174
  %192 = vst.msk [vmem:[%s3 + $0x30] sm:$0xff] %vm185, %v175
  %193 = vst.msk [vmem:[%s3 + $0x38] sm:$0xff] %vm185, %v176
  %194 = vst.msk [vmem:[%s3 + $0x40] sm:$0xff] %vm185, %v177
  %195 = vst.msk [vmem:[%s3 + $0x48] sm:$0xff] %vm185, %v178
  %196 = vst.msk [vmem:[%s3 + $0x50] sm:$0xff] %vm185, %v179
  %197 = vst.msk [vmem:[%s3 + $0x58] sm:$0xff] %vm185, %v180
  %198 = vst.msk [vmem:[%s3 + $0x60] sm:$0xff] %vm185, %v181
  %199 = vst.msk [vmem:[%s3 + $0x68] sm:$0xff] %vm185, %v182
  %200 = vst.msk [vmem:[%s3 + $0x70] sm:$0xff] %vm185, %v183
  %201 = vst.msk [vmem:[%s3 + $0x78] sm:$0xff] %vm185, %v184
  // Predicated region
  $region14: #{tpu_custom_call.1} parent=0 // pred_check
    _
  $region15: #{tpu_custom_call.1} parent=0 // pred_check_branch
    %203 = sbr.rel (0) target = $region17
  $region16: #{tpu_custom_call.1} parent=0 // pred_region
    _
  $region17: #{tpu_custom_call.1} parent=0 // pred_fallthru
    _
  // Predicated region
  $region18: #{tpu_custom_call.1} parent=0 // pred_check
    _
  $region19: #{tpu_custom_call.1} parent=0 // pred_check_branch
    %205 = sbr.rel (0) target = $region21
  $region20: #{tpu_custom_call.1} parent=0 // pred_region
    _
  $region21: #{tpu_custom_call.1} parent=0 // pred_fallthru
    _

</llo_original>
